<compile_context>
chip_gen: v5e
topology: v5e:2x2
jax: 0.10.0
libtpu: 0.0.40
codegen_flags: <defaults>
</compile_context>

<pallas_src>
import functools

import jax
import jax.numpy as jnp
from jax.experimental import pallas as pl
from jax.experimental.pallas import tpu as pltpu


def _round_up(a: int, b: int) -> int:
    return ((a + b - 1) // b) * b


def _pad_cast_2d(a, rows: int, cols: int, dtype):
    """Cast to `dtype` and zero-pad to (rows, cols); skips the pad copy if already sized."""
    a = a.astype(dtype)
    if a.shape == (rows, cols):
        return a
    return jnp.zeros((rows, cols), dtype).at[: a.shape[0], : a.shape[1]].set(a)


# --------------------------------------------------------------------------------------
# Kernel
# --------------------------------------------------------------------------------------
def mlp_kernel(x_ref, w1_ref, b1_ref, w2_ref, b2_ref, o_ref, *, out_valid: int):
    # Linear 1: bf16 x bf16 on the MXU, f32 accumulation; bias + LeakyReLU in f32 (VPU).
    h = jnp.dot(x_ref[...], w1_ref[...], preferred_element_type=jnp.float32)
    h = h + b1_ref[...]
    h = jnp.where(h > 0, h, 0.01 * h)  # PyTorch LeakyReLU default negative_slope = 0.01

    # Linear 2: cast activations back to bf16 for the MXU, accumulate in f32.
    logits = jnp.dot(h.astype(jnp.bfloat16), w2_ref[...],
                     preferred_element_type=jnp.float32)
    logits = logits + b2_ref[...]

    # Exclude lane-padding columns from the log-sum-exp.
    out_pad = logits.shape[-1]
    if out_valid < out_pad:
        lane = jax.lax.broadcasted_iota(jnp.int32, (1, out_pad), 1)
        logits = jnp.where(lane < out_valid, logits, -1e30)

    # log_softmax along the feature axis, in f32 (exp/log on the EUP).
    m = jnp.max(logits, axis=-1, keepdims=True)
    shifted = logits - m
    lse = jnp.log(jnp.sum(jnp.exp(shifted), axis=-1, keepdims=True))
    o_ref[...] = (shifted - lse).astype(o_ref.dtype)


# --------------------------------------------------------------------------------------
# One-time parameter prep (hoisted out of the per-call path)
# --------------------------------------------------------------------------------------
def prepare_params(w1, b1, w2, b2):
    """Pad feature dims to multiples of 128 and cast MXU operands to bf16, once.

    w1: [in, hid], w2: [hid, out] are stored already transposed so the kernel computes
    x @ W + b (equivalent to PyTorch's y = x @ W.T + b). Biases stay f32.
    """
    in_feats, hid_feats = w1.shape
    hid_w2, out_feats = w2.shape
    assert hid_w2 == hid_feats

    in_p = _round_up(in_feats, 128)
    hid_p = _round_up(hid_feats, 128)
    out_p = _round_up(out_feats, 128)

    w1_p = _pad_cast_2d(w1, in_p, hid_p, jnp.bfloat16)
    b1_p = _pad_cast_2d(b1.reshape(1, -1), 1, hid_p, jnp.float32)
    w2_p = _pad_cast_2d(w2, hid_p, out_p, jnp.bfloat16)
    b2_p = _pad_cast_2d(b2.reshape(1, -1), 1, out_p, jnp.float32)

    dims = dict(in_feats=in_feats, hid_feats=hid_feats, out_feats=out_feats,
                in_p=in_p, hid_p=hid_p, out_p=out_p)
    return (w1_p, b1_p, w2_p, b2_p), dims


def _choose_tm(n_rows: int, tm_cap: int = 256):
    """Row tile: multiple of 16 (bf16 sublane pack), capped at 256 (256x256 MXU, VMEM)."""
    tm = min(tm_cap, _round_up(n_rows, 16))
    n_p = _round_up(n_rows, tm)
    # Give v7x's 2 TensorCores >=2 row tiles to shard once the batch is big enough
    # that splitting beats the ~0.35us per-step overhead (no-op on 1-TC v5e/v6e).
    if n_p // tm < 2 and n_rows >= 256:
        tm = max(16, _round_up((n_rows + 1) // 2, 16))
        n_p = _round_up(n_rows, tm)
    return tm, n_p


def _vmem_limit_bytes(tm, in_p, hid_p, out_p, out_itemsize):
    x_tile = 2 * tm * in_p * 2                      # bf16 x tile, double buffered
    out_tile = 2 * tm * out_p * out_itemsize        # output tile, double buffered
    weights = (in_p * hid_p + hid_p * out_p) * 2    # bf16 weights, single buffered
    biases = 2 * 8 * (hid_p + out_p) * 4            # f32 biases (sublane-padded)
    scratch = tm * hid_p * (4 + 2) + tm * out_p * 4  # f32 h + bf16 h + f32 logits
    need = x_tile + out_tile + weights + biases + scratch
    # 25% headroom + 2 MiB for Mosaic internal scratch; clamp to sane bounds (<= v7x VMEM).
    return int(min(max(need * 1.25 + (2 << 20), 16 << 20), 64 << 20))


# --------------------------------------------------------------------------------------
# Forward call
# --------------------------------------------------------------------------------------
def mlp_forward(x, params, dims, *, tm_cap=256, out_dtype=jnp.float32):
    """x: [N, in_feats]; params from prepare_params(). Returns log_softmax(MLP(x))."""
    w1_p, b1_p, w2_p, b2_p = params
    n_rows, in_feats = x.shape
    assert in_feats == dims["in_feats"]
    in_p, hid_p, out_p = dims["in_p"], dims["hid_p"], dims["out_p"]
    out_feats = dims["out_feats"]

    tm, n_p = _choose_tm(n_rows, tm_cap)
    grid = (n_p // tm,)

    # Only the activation is padded/cast per call (weights were prepped once).
    x_p = _pad_cast_2d(x, n_p, in_p, jnp.bfloat16)

    out_itemsize = jnp.dtype(out_dtype).itemsize
    cost = pl.CostEstimate(
        flops=2 * n_p * (in_p * hid_p + hid_p * out_p),
        transcendentals=n_p * out_p + n_p,
        bytes_accessed=(x_p.size * 2 + w1_p.size * 2 + w2_p.size * 2
                        + b1_p.size * 4 + b2_p.size * 4 + n_p * out_p * out_itemsize),
    )
    compiler_params = pltpu.CompilerParams(
        dimension_semantics=("parallel",),
        vmem_limit_bytes=_vmem_limit_bytes(tm, in_p, hid_p, out_p, out_itemsize),
    )

    def _run(single_buffer_weights: bool):
        # Constant-index (resident) blocks don't need a second pipeline buffer.
        if single_buffer_weights:
            res_kw = dict(pipeline_mode=pl.Buffered(buffer_count=1))
        else:
            res_kw = {}
        return pl.pallas_call(
            functools.partial(mlp_kernel, out_valid=out_feats),
            out_shape=jax.ShapeDtypeStruct((n_p, out_p), out_dtype),
            grid_spec=pl.GridSpec(
                grid=grid,
                in_specs=[
                    pl.BlockSpec((tm, in_p), lambda i: (i, 0)),            # x row tile
                    pl.BlockSpec((in_p, hid_p), lambda i: (0, 0), **res_kw),  # w1 resident
                    pl.BlockSpec((1, hid_p), lambda i: (0, 0), **res_kw),     # b1 resident
                    pl.BlockSpec((hid_p, out_p), lambda i: (0, 0), **res_kw),  # w2 resident
                    pl.BlockSpec((1, out_p), lambda i: (0, 0), **res_kw),      # b2 resident
                ],
                out_specs=pl.BlockSpec((tm, out_p), lambda i: (i, 0)),
            ),
            compiler_params=compiler_params,
            cost_estimate=cost,
        )(x_p, w1_p, b1_p, w2_p, b2_p)

    try:
        out_padded = _run(True)
    except Exception:  # fallback for jax versions without single-buffer pipeline_mode
        out_padded = _run(False)

    return out_padded[:n_rows, :out_feats]


# --------------------------------------------------------------------------------------
# References
# --------------------------------------------------------------------------------------
def reference_forward_f32(x, w1, b1, w2, b2):
    h = x @ w1 + b1
    h = jnp.where(h > 0, h, 0.01 * h)
    logits = h @ w2 + b2
    return jax.nn.log_softmax(logits, axis=1)


def reference_forward_bf16_matched(x, w1, b1, w2, b2):
    """Mirrors the kernel's numerics: bf16 MXU operands, f32 accumulation/elementwise."""
    xf = x.astype(jnp.bfloat16).astype(jnp.float32)
    w1f = w1.astype(jnp.bfloat16).astype(jnp.float32)
    w2f = w2.astype(jnp.bfloat16).astype(jnp.float32)
    h = xf @ w1f + b1
    h = jnp.where(h > 0, h, 0.01 * h)
    h = h.astype(jnp.bfloat16).astype(jnp.float32)
    logits = h @ w2f + b2
    return jax.nn.log_softmax(logits, axis=1)


if __name__ == "__main__":
    # Small shapes consistent with MLP(in_feats=32, hid_feats=64, out_feats=16).
    N, in_feats, hid_feats, out_feats = 16, 32, 64, 16

    key = jax.random.PRNGKey(0)
    kx, k1, k2, k3, k4 = jax.random.split(key, 5)

    x = jax.random.normal(kx, (N, in_feats), dtype=jnp.float32)

    # Deterministic PyTorch-like uniform fan-in init, stored as [in, out] for the kernel.
    lim1 = 1.0 / jnp.sqrt(in_feats)
    w1 = jax.random.uniform(k1, (in_feats, hid_feats), jnp.float32, -lim1, lim1)
    b1 = jax.random.uniform(k2, (1, hid_feats), jnp.float32, -lim1, lim1)

    lim2 = 1.0 / jnp.sqrt(hid_feats)
    w2 = jax.random.uniform(k3, (hid_feats, out_feats), jnp.float32, -lim2, lim2)
    b2 = jax.random.uniform(k4, (1, out_feats), jnp.float32, -lim2, lim2)

    # One-time parameter prep (off the per-call path).
    params, dims = prepare_params(w1, b1, w2, b2)
    params = jax.block_until_ready(params)

    out = mlp_forward(x, params, dims)
    out = jax.block_until_ready(out)
    assert out.shape == (N, out_feats)

    # Tight check against a reference with matching bf16-MXU numerics.
    ref_bf16 = reference_forward_bf16_matched(x, w1, b1, w2, b2)
    assert jnp.allclose(out, ref_bf16, atol=1e-4, rtol=1e-4), "mismatch vs bf16-matched reference"

    # Sanity check against the pure-f32 PyTorch-equivalent forward (bf16 rounding tolerance).
    ref_f32 = reference_forward_f32(x, w1, b1, w2, b2)
    assert jnp.allclose(out, ref_f32, atol=3e-2, rtol=3e-2), "mismatch vs f32 reference"

    print("KERNEL_OK")
</pallas_src>

<mosaic_0001>
module attributes {stable_mosaic.version = 11 : i64} {
  func.func @mlp_kernel(%arg0: i32, %arg1: memref<16x128xbf16, #tpu.memory_space<vmem>>, %arg2: memref<128x128xbf16, #tpu.memory_space<vmem>>, %arg3: memref<1x128xf32, #tpu.memory_space<vmem>>, %arg4: memref<128x128xbf16, #tpu.memory_space<vmem>>, %arg5: memref<1x128xf32, #tpu.memory_space<vmem>>, %arg6: memref<16x128xf32, #tpu.memory_space<vmem>>) attributes {dimension_semantics = [#tpu.dimension_semantics<parallel>], iteration_bounds = array<i64: 1>, scalar_prefetch = 0 : i64, scratch_operands = 0 : i64, tpu.core_type = #tpu.core_type<tc>, window_params = [{transform_indices = @transform_0, window_bounds = array<i64: 16, 128>}, {pipeline_mode = #tpu.pipeline_mode<synchronous>, transform_indices = @transform_1, window_bounds = array<i64: 128, 128>}, {pipeline_mode = #tpu.pipeline_mode<synchronous>, transform_indices = @transform_2, window_bounds = array<i64: 1, 128>}, {pipeline_mode = #tpu.pipeline_mode<synchronous>, transform_indices = @transform_3, window_bounds = array<i64: 128, 128>}, {pipeline_mode = #tpu.pipeline_mode<synchronous>, transform_indices = @transform_4, window_bounds = array<i64: 1, 128>}, {transform_indices = @transform_5, window_bounds = array<i64: 16, 128>}]} {
    %c0 = arith.constant 0 : index
    %c0_0 = arith.constant 0 : index
    %0 = vector.load %arg1[%c0, %c0_0] : memref<16x128xbf16, #tpu.memory_space<vmem>>, vector<16x128xbf16>
    %c0_1 = arith.constant 0 : index
    %c0_2 = arith.constant 0 : index
    %1 = vector.load %arg2[%c0_1, %c0_2] : memref<128x128xbf16, #tpu.memory_space<vmem>>, vector<128x128xbf16>
    %cst = arith.constant dense<0.000000e+00> : vector<16x128xf32>
    %2 = tpu.matmul %0, %1, %cst {dimension_numbers = #tpu.dot_dimension_numbers<[1], [0], [0], [1], [0, 0, 1, 1], [], []>} : vector<16x128xbf16>, vector<128x128xbf16>, vector<16x128xf32> -> vector<16x128xf32>
    %c0_3 = arith.constant 0 : index
    %c0_4 = arith.constant 0 : index
    %3 = vector.load %arg3[%c0_3, %c0_4] : memref<1x128xf32, #tpu.memory_space<vmem>>, vector<1x128xf32>
    %4 = vector.broadcast %3 : vector<1x128xf32> to vector<16x128xf32>
    %5 = arith.addf %2, %4 : vector<16x128xf32>
    %cst_5 = arith.constant 0.000000e+00 : f32
    %6 = vector.broadcast %cst_5 : f32 to vector<16x128xf32>
    %7 = arith.cmpf ogt, %5, %6 : vector<16x128xf32>
    %cst_6 = arith.constant 0.00999999977 : f32
    %8 = vector.broadcast %cst_6 : f32 to vector<16x128xf32>
    %9 = arith.mulf %8, %5 : vector<16x128xf32>
    %10 = arith.select %7, %5, %9 : vector<16x128xi1>, vector<16x128xf32>
    %11 = arith.truncf %10 : vector<16x128xf32> to vector<16x128xbf16>
    %c0_7 = arith.constant 0 : index
    %c0_8 = arith.constant 0 : index
    %12 = vector.load %arg4[%c0_7, %c0_8] : memref<128x128xbf16, #tpu.memory_space<vmem>>, vector<128x128xbf16>
    %cst_9 = arith.constant dense<0.000000e+00> : vector<16x128xf32>
    %13 = tpu.matmul %11, %12, %cst_9 {dimension_numbers = #tpu.dot_dimension_numbers<[1], [0], [0], [1], [0, 0, 1, 1], [], []>} : vector<16x128xbf16>, vector<128x128xbf16>, vector<16x128xf32> -> vector<16x128xf32>
    %c0_10 = arith.constant 0 : index
    %c0_11 = arith.constant 0 : index
    %14 = vector.load %arg5[%c0_10, %c0_11] : memref<1x128xf32, #tpu.memory_space<vmem>>, vector<1x128xf32>
    %15 = vector.broadcast %14 : vector<1x128xf32> to vector<16x128xf32>
    %16 = arith.addf %13, %15 : vector<16x128xf32>
    %17 = tpu.iota {dimensions = array<i32: 1>} : vector<1x128xi32>
    %c16_i32 = arith.constant 16 : i32
    %18 = vector.broadcast %c16_i32 : i32 to vector<1x128xi32>
    %19 = arith.cmpi slt, %17, %18 : vector<1x128xi32>
    %cst_12 = arith.constant -1.000000e+30 : f32
    %20 = vector.shape_cast %19 : vector<1x128xi1> to vector<1x128xi1>
    %21 = vector.broadcast %20 : vector<1x128xi1> to vector<16x128xi1>
    %22 = vector.broadcast %cst_12 : f32 to vector<16x128xf32>
    %23 = arith.select %21, %16, %22 : vector<16x128xi1>, vector<16x128xf32>
    %cst_13 = arith.constant dense<0xFF800000> : vector<16xf32>
    %24 = vector.multi_reduction <maximumf>, %23, %cst_13 [1] : vector<16x128xf32> to vector<16xf32>
    %25 = vector.shape_cast %24 : vector<16xf32> to vector<16x1xf32>
    %26 = vector.broadcast %25 : vector<16x1xf32> to vector<16x128xf32>
    %27 = arith.subf %23, %26 : vector<16x128xf32>
    %28 = math.exp %27 : vector<16x128xf32>
    %cst_14 = arith.constant dense<0.000000e+00> : vector<16xf32>
    %29 = vector.multi_reduction <add>, %28, %cst_14 [1] : vector<16x128xf32> to vector<16xf32>
    %30 = vector.shape_cast %29 : vector<16xf32> to vector<16x1xf32>
    %31 = math.log %30 : vector<16x1xf32>
    %32 = vector.broadcast %31 : vector<16x1xf32> to vector<16x128xf32>
    %33 = arith.subf %27, %32 : vector<16x128xf32>
    %c0_15 = arith.constant 0 : index
    %c0_16 = arith.constant 0 : index
    %34 = vector.load %arg6[%c0_15, %c0_16] : memref<16x128xf32, #tpu.memory_space<vmem>>, vector<16x128xf32>
    tpu.vector_store %arg6[%c0_15, %c0_16], %33 {strides = array<i32>} : memref<16x128xf32, #tpu.memory_space<vmem>>, vector<16x128xf32>,
    return
  }
  func.func @transform_0(%arg0: i32) -> (i32, i32) {
    %c0_i32 = arith.constant 0 : i32
    %c0_i32_0 = arith.constant 0 : i32
    return %arg0, %c0_i32 : i32, i32
  }
  func.func @transform_1(%arg0: i32) -> (i32, i32) {
    %c0_i32 = arith.constant 0 : i32
    %c0_i32_0 = arith.constant 0 : i32
    %c0_i32_1 = arith.constant 0 : i32
    return %c0_i32, %c0_i32_0 : i32, i32
  }
  func.func @transform_2(%arg0: i32) -> (i32, i32) {
    %c0_i32 = arith.constant 0 : i32
    %c0_i32_0 = arith.constant 0 : i32
    %c0_i32_1 = arith.constant 0 : i32
    return %c0_i32, %c0_i32_0 : i32, i32
  }
  func.func @transform_3(%arg0: i32) -> (i32, i32) {
    %c0_i32 = arith.constant 0 : i32
    %c0_i32_0 = arith.constant 0 : i32
    %c0_i32_1 = arith.constant 0 : i32
    return %c0_i32, %c0_i32_0 : i32, i32
  }
  func.func @transform_4(%arg0: i32) -> (i32, i32) {
    %c0_i32 = arith.constant 0 : i32
    %c0_i32_0 = arith.constant 0 : i32
    %c0_i32_1 = arith.constant 0 : i32
    return %c0_i32, %c0_i32_0 : i32, i32
  }
  func.func @transform_5(%arg0: i32) -> (i32, i32) {
    %c0_i32 = arith.constant 0 : i32
    %c0_i32_0 = arith.constant 0 : i32
    return %arg0, %c0_i32 : i32, i32
  }
}

module attributes {stable_mosaic.version = 11 : i64} {
  func.func @mlp_kernel(%arg0: i32, %arg1: memref<16x128xbf16, #tpu.memory_space<vmem>>, %arg2: memref<128x128xbf16, #tpu.memory_space<vmem>>, %arg3: memref<1x128xf32, #tpu.memory_space<vmem>>, %arg4: memref<128x128xbf16, #tpu.memory_space<vmem>>, %arg5: memref<1x128xf32, #tpu.memory_space<vmem>>, %arg6: memref<16x128xf32, #tpu.memory_space<vmem>>) attributes {dimension_semantics = [#tpu.dimension_semantics<parallel>], iteration_bounds = array<i64: 1>, scalar_prefetch = 0 : i64, scratch_operands = 0 : i64, tpu.core_type = #tpu.core_type<tc>, window_params = [{transform_indices = @transform_0, window_bounds = array<i64: 16, 128>}, {pipeline_mode = #tpu.pipeline_mode<synchronous>, transform_indices = @transform_1, window_bounds = array<i64: 128, 128>}, {pipeline_mode = #tpu.pipeline_mode<synchronous>, transform_indices = @transform_2, window_bounds = array<i64: 1, 128>}, {pipeline_mode = #tpu.pipeline_mode<synchronous>, transform_indices = @transform_3, window_bounds = array<i64: 128, 128>}, {pipeline_mode = #tpu.pipeline_mode<synchronous>, transform_indices = @transform_4, window_bounds = array<i64: 1, 128>}, {transform_indices = @transform_5, window_bounds = array<i64: 16, 128>}]} {
    %c0 = arith.constant 0 : index
    %c0_0 = arith.constant 0 : index
    %0 = vector.load %arg1[%c0, %c0_0] : memref<16x128xbf16, #tpu.memory_space<vmem>>, vector<16x128xbf16>
    %c0_1 = arith.constant 0 : index
    %c0_2 = arith.constant 0 : index
    %1 = vector.load %arg2[%c0_1, %c0_2] : memref<128x128xbf16, #tpu.memory_space<vmem>>, vector<128x128xbf16>
    %cst = arith.constant dense<0.000000e+00> : vector<16x128xf32>
    %2 = tpu.matmul %0, %1, %cst {dimension_numbers = #tpu.dot_dimension_numbers<[1], [0], [0], [1], [0, 0, 1, 1], [], []>} : vector<16x128xbf16>, vector<128x128xbf16>, vector<16x128xf32> -> vector<16x128xf32>
    %c0_3 = arith.constant 0 : index
    %c0_4 = arith.constant 0 : index
    %3 = vector.load %arg3[%c0_3, %c0_4] : memref<1x128xf32, #tpu.memory_space<vmem>>, vector<1x128xf32>
    %4 = vector.broadcast %3 : vector<1x128xf32> to vector<16x128xf32>
    %5 = arith.addf %2, %4 : vector<16x128xf32>
    %cst_5 = arith.constant 0.000000e+00 : f32
    %6 = vector.broadcast %cst_5 : f32 to vector<16x128xf32>
    %7 = arith.cmpf ogt, %5, %6 : vector<16x128xf32>
    %cst_6 = arith.constant 0.00999999977 : f32
    %8 = vector.broadcast %cst_6 : f32 to vector<16x128xf32>
    %9 = arith.mulf %8, %5 : vector<16x128xf32>
    %10 = arith.select %7, %5, %9 : vector<16x128xi1>, vector<16x128xf32>
    %11 = arith.truncf %10 : vector<16x128xf32> to vector<16x128xbf16>
    %c0_7 = arith.constant 0 : index
    %c0_8 = arith.constant 0 : index
    %12 = vector.load %arg4[%c0_7, %c0_8] : memref<128x128xbf16, #tpu.memory_space<vmem>>, vector<128x128xbf16>
    %cst_9 = arith.constant dense<0.000000e+00> : vector<16x128xf32>
    %13 = tpu.matmul %11, %12, %cst_9 {dimension_numbers = #tpu.dot_dimension_numbers<[1], [0], [0], [1], [0, 0, 1, 1], [], []>} : vector<16x128xbf16>, vector<128x128xbf16>, vector<16x128xf32> -> vector<16x128xf32>
    %c0_10 = arith.constant 0 : index
    %c0_11 = arith.constant 0 : index
    %14 = vector.load %arg5[%c0_10, %c0_11] : memref<1x128xf32, #tpu.memory_space<vmem>>, vector<1x128xf32>
    %15 = vector.broadcast %14 : vector<1x128xf32> to vector<16x128xf32>
    %16 = arith.addf %13, %15 : vector<16x128xf32>
    %17 = tpu.iota {dimensions = array<i32: 1>} : vector<1x128xi32>
    %c16_i32 = arith.constant 16 : i32
    %18 = vector.broadcast %c16_i32 : i32 to vector<1x128xi32>
    %19 = arith.cmpi slt, %17, %18 : vector<1x128xi32>
    %cst_12 = arith.constant -1.000000e+30 : f32
    %20 = vector.shape_cast %19 : vector<1x128xi1> to vector<1x128xi1>
    %21 = vector.broadcast %20 : vector<1x128xi1> to vector<16x128xi1>
    %22 = vector.broadcast %cst_12 : f32 to vector<16x128xf32>
    %23 = arith.select %21, %16, %22 : vector<16x128xi1>, vector<16x128xf32>
    %cst_13 = arith.constant dense<0xFF800000> : vector<16xf32>
    %24 = vector.multi_reduction <maximumf>, %23, %cst_13 [1] : vector<16x128xf32> to vector<16xf32>
    %25 = vector.shape_cast %24 : vector<16xf32> to vector<16x1xf32>
    %26 = vector.broadcast %25 : vector<16x1xf32> to vector<16x128xf32>
    %27 = arith.subf %23, %26 : vector<16x128xf32>
    %28 = math.exp %27 : vector<16x128xf32>
    %cst_14 = arith.constant dense<0.000000e+00> : vector<16xf32>
    %29 = vector.multi_reduction <add>, %28, %cst_14 [1] : vector<16x128xf32> to vector<16xf32>
    %30 = vector.shape_cast %29 : vector<16xf32> to vector<16x1xf32>
    %31 = math.log %30 : vector<16x1xf32>
    %32 = vector.broadcast %31 : vector<16x1xf32> to vector<16x128xf32>
    %33 = arith.subf %27, %32 : vector<16x128xf32>
    %c0_15 = arith.constant 0 : index
    %c0_16 = arith.constant 0 : index
    %34 = vector.load %arg6[%c0_15, %c0_16] : memref<16x128xf32, #tpu.memory_space<vmem>>, vector<16x128xf32>
    tpu.vector_store %arg6[%c0_15, %c0_16], %33 {strides = array<i32>} : memref<16x128xf32, #tpu.memory_space<vmem>>, vector<16x128xf32>,
    return
  }
  func.func @transform_0(%arg0: i32) -> (i32, i32) {
    %c0_i32 = arith.constant 0 : i32
    %c0_i32_0 = arith.constant 0 : i32
    return %arg0, %c0_i32 : i32, i32
  }
  func.func @transform_1(%arg0: i32) -> (i32, i32) {
    %c0_i32 = arith.constant 0 : i32
    %c0_i32_0 = arith.constant 0 : i32
    %c0_i32_1 = arith.constant 0 : i32
    return %c0_i32, %c0_i32_0 : i32, i32
  }
  func.func @transform_2(%arg0: i32) -> (i32, i32) {
    %c0_i32 = arith.constant 0 : i32
    %c0_i32_0 = arith.constant 0 : i32
    %c0_i32_1 = arith.constant 0 : i32
    return %c0_i32, %c0_i32_0 : i32, i32
  }
  func.func @transform_3(%arg0: i32) -> (i32, i32) {
    %c0_i32 = arith.constant 0 : i32
    %c0_i32_0 = arith.constant 0 : i32
    %c0_i32_1 = arith.constant 0 : i32
    return %c0_i32, %c0_i32_0 : i32, i32
  }
  func.func @transform_4(%arg0: i32) -> (i32, i32) {
    %c0_i32 = arith.constant 0 : i32
    %c0_i32_0 = arith.constant 0 : i32
    %c0_i32_1 = arith.constant 0 : i32
    return %c0_i32, %c0_i32_0 : i32, i32
  }
  func.func @transform_5(%arg0: i32) -> (i32, i32) {
    %c0_i32 = arith.constant 0 : i32
    %c0_i32_0 = arith.constant 0 : i32
    return %arg0, %c0_i32 : i32, i32
  }
}

</mosaic_0001>

<llo_original>
// kernel: tpu_custom_call.1
$region0: #{tpu_custom_call.1}
  #allocation0 [shape = 'u32[]', space=smem, size = 0x4, offset = 0x4, fixed_abs, tag = 'smem constant byte address 0x4 - core index']
  #allocation1 [shape = 'u32[72,128]{1,0:T(1,128)}', space=vmem, size = 0x9000, scoped, tag = 'internal scratch']
  %s0 = inlined_call_operand.hbm [shape: bf16[16,128], index: 0, kind: input, shape index: {}]
  %s1 = inlined_call_operand.hbm [shape: bf16[128,128], index: 1, kind: input, shape index: {}]
  %s2 = inlined_call_operand.vmem [shape: f32[1,128], index: 2, kind: input, shape index: {}]
  %s3 = inlined_call_operand.hbm [shape: bf16[128,128], index: 3, kind: input, shape index: {}]
  %s4 = inlined_call_operand.vmem [shape: f32[1,128], index: 4, kind: input, shape index: {}]
  %s5 = inlined_call_operand.hbm [shape: f32[16,128], index: 5, kind: output, shape index: {}]
  %s6 = sld [smem:[#allocation0]]
  $region42: #{tpu_custom_call.1} parent=0
    _
  %s8 = ssub.s32 1, %s6
  %s9 = scalar_select 0, %s8, %s6
  $region1: #{tpu_custom_call.1} parent=0
    #allocation2 [shape = 'u8[4096]{0}', space=vmem, size = 0x1000, scoped, tag = 'input window, operand 0, single buffered']
    #allocation3 [shape = 's32[1]{0}', space=sflag, size = 0x4, scoped, tag = 'scoped memory for tpu_custom_call.1']
    #allocation4 [shape = 's32[1]{0}', space=sflag, size = 0x4, scoped, tag = 'scoped memory for tpu_custom_call.1']
    #allocation5 [shape = 'u8[32768]{0}', space=vmem, size = 0x8000, scoped, tag = 'input window, operand 1, single buffered']
    #allocation6 [shape = 's32[1]{0}', space=sflag, size = 0x4, scoped, tag = 'scoped memory for tpu_custom_call.1']
    #allocation7 [shape = 'u8[32768]{0}', space=vmem, size = 0x8000, scoped, tag = 'input window, operand 3, single buffered']
    #allocation8 [shape = 'u8[8192]{0}', space=vmem, size = 0x2000, scoped, tag = 'output window, operand 0, single buffered']
    %10 = vsyncpa [#allocation3], 0
    %11 = vsyncpa [#allocation6], 0
    %12 = vsyncpa [#allocation4], 0
    // Predicated region
    $region2: #{tpu_custom_call.1} parent=1 // pred_check
      _
    $region3: #{tpu_custom_call.1} parent=1 // pred_check_branch
      %14 = sbr.rel (0) target = $region5
    $region4: #{tpu_custom_call.1} parent=1 // pred_region
      %16 = vsyncadd [#allocation3], 0
      %s17 = sshll.u32 %s0, 4
      %s18 = int_to_ptr.hbm [resolvable:$true] %s17
      %s19 = sshll.u32 [#allocation2], 4
      %s20 = int_to_ptr.vmem [resolvable:$true] %s19
      %25 = dma.hbm_to_vmem [thread:$0]  %s18, 128, %s20, [#allocation3], 64, 64, 4
    $region5: #{tpu_custom_call.1} parent=1 // pred_fallthru
      _
    // Predicated region
    $region6: #{tpu_custom_call.1} parent=1 // pred_check
      _
    $region7: #{tpu_custom_call.1} parent=1 // pred_check_branch
      %27 = sbr.rel (0) target = $region9
    $region8: #{tpu_custom_call.1} parent=1 // pred_region
      %29 = vsyncadd [#allocation6], 0
      %s30 = sshll.u32 %s1, 4
      %s31 = int_to_ptr.hbm [resolvable:$true] %s30
      %s32 = sshll.u32 [#allocation5], 4
      %s33 = int_to_ptr.vmem [resolvable:$true] %s32
      %38 = dma.hbm_to_vmem [thread:$0]  %s31, 1024, %s33, [#allocation6], 64, 64, 4
    $region9: #{tpu_custom_call.1} parent=1 // pred_fallthru
      _
    // Predicated region
    $region10: #{tpu_custom_call.1} parent=1 // pred_check
      _
    $region11: #{tpu_custom_call.1} parent=1 // pred_check_branch
      %40 = sbr.rel (0) target = $region13
    $region12: #{tpu_custom_call.1} parent=1 // pred_region
      _
    $region13: #{tpu_custom_call.1} parent=1 // pred_fallthru
      _
    // Predicated region
    $region14: #{tpu_custom_call.1} parent=1 // pred_check
      _
    $region15: #{tpu_custom_call.1} parent=1 // pred_check_branch
      %42 = sbr.rel (0) target = $region17
    $region16: #{tpu_custom_call.1} parent=1 // pred_region
      %44 = vsyncadd [#allocation6], 0
      %s45 = sshll.u32 %s3, 4
      %s46 = int_to_ptr.hbm [resolvable:$true] %s45
      %s47 = sshll.u32 [#allocation7], 4
      %s48 = int_to_ptr.vmem [resolvable:$true] %s47
      %53 = dma.hbm_to_vmem [thread:$0]  %s46, 1024, %s48, [#allocation6], 64, 64, 4
    $region17: #{tpu_custom_call.1} parent=1 // pred_fallthru
      _
    // Predicated region
    $region18: #{tpu_custom_call.1} parent=1 // pred_check
      _
    $region19: #{tpu_custom_call.1} parent=1 // pred_check_branch
      %55 = sbr.rel (0) target = $region21
    $region20: #{tpu_custom_call.1} parent=1 // pred_region
      _
    $region21: #{tpu_custom_call.1} parent=1 // pred_fallthru
      _
    // Predicated region
    $region22: #{tpu_custom_call.1} parent=1 // pred_check
      _
    $region23: #{tpu_custom_call.1} parent=1 // pred_check_branch
      %57 = sbr.rel (0) target = $region25
    $region24: #{tpu_custom_call.1} parent=1 // pred_region
      %59 = dma.done [#allocation3], 128
    $region25: #{tpu_custom_call.1} parent=1 // pred_fallthru
      _
    // Predicated region
    $region26: #{tpu_custom_call.1} parent=1 // pred_check
      _
    $region27: #{tpu_custom_call.1} parent=1 // pred_check_branch
      %61 = sbr.rel (0) target = $region29
    $region28: #{tpu_custom_call.1} parent=1 // pred_region
      %63 = dma.done [#allocation6], 1024
    $region29: #{tpu_custom_call.1} parent=1 // pred_fallthru
      _
    // Predicated region
    $region30: #{tpu_custom_call.1} parent=1 // pred_check
      _
    $region31: #{tpu_custom_call.1} parent=1 // pred_check_branch
      %65 = sbr.rel (0) target = $region33
    $region32: #{tpu_custom_call.1} parent=1 // pred_region
      %67 = dma.done [#allocation6], 1024
    $region33: #{tpu_custom_call.1} parent=1 // pred_fallthru
      _
    %v68 = vld [vmem:[#allocation2] sm:$0xf]
    %v69 = vld [vmem:[#allocation2 + $0x4] sm:$0xf]
    %v70 = vld [vmem:[#allocation5] sm:$0xf]
    %v71 = vld [vmem:[#allocation5 + $0x4] sm:$0xf]
    %v72 = vld [vmem:[#allocation5 + $0x8] sm:$0xf]
    %v73 = vld [vmem:[#allocation5 + $0xc] sm:$0xf]
    %v74 = vld [vmem:[#allocation5 + $0x10] sm:$0xf]
    %v75 = vld [vmem:[#allocation5 + $0x14] sm:$0xf]
    %v76 = vld [vmem:[#allocation5 + $0x18] sm:$0xf]
    %v77 = vld [vmem:[#allocation5 + $0x1c] sm:$0xf]
    %v78 = vld [vmem:[#allocation5 + $0x20] sm:$0xf]
    %v79 = vld [vmem:[#allocation5 + $0x24] sm:$0xf]
    %v80 = vld [vmem:[#allocation5 + $0x28] sm:$0xf]
    %v81 = vld [vmem:[#allocation5 + $0x2c] sm:$0xf]
    %v82 = vld [vmem:[#allocation5 + $0x30] sm:$0xf]
    %v83 = vld [vmem:[#allocation5 + $0x34] sm:$0xf]
    %v84 = vld [vmem:[#allocation5 + $0x38] sm:$0xf]
    %v85 = vld [vmem:[#allocation5 + $0x3c] sm:$0xf]
    %v86 = vld [vmem:[%s2] sm:$0x1]
    %v88 = vperm.slane %v86, 0
    %v92 = vunpack.c.l.b16 %v68
    %v93 = vunpack.c.l.b16 %v69
    %v94 = vpack.c.b16 %v93, %v92
    %v112 = vunpack.c.l.b16 %v70
    %v113 = vunpack.c.l.b16 %v71
    %v114 = vunpack.c.l.b16 %v72
    %v115 = vunpack.c.l.b16 %v73
    %v116 = vunpack.c.l.b16 %v74
    %v117 = vunpack.c.l.b16 %v75
    %v118 = vunpack.c.l.b16 %v76
    %v119 = vunpack.c.l.b16 %v77
    %v120 = vunpack.c.l.b16 %v78
    %v121 = vunpack.c.l.b16 %v79
    %v122 = vunpack.c.l.b16 %v80
    %v123 = vunpack.c.l.b16 %v81
    %v124 = vunpack.c.l.b16 %v82
    %v125 = vunpack.c.l.b16 %v83
    %v126 = vunpack.c.l.b16 %v84
    %v127 = vunpack.c.l.b16 %v85
    %v128 = vpack.c.b16 %v113, %v112
    %v129 = vpack.c.b16 %v115, %v114
    %v130 = vpack.c.b16 %v117, %v116
    %v131 = vpack.c.b16 %v119, %v118
    %v132 = vpack.c.b16 %v121, %v120
    %v133 = vpack.c.b16 %v123, %v122
    %v134 = vpack.c.b16 %v125, %v124
    %v135 = vpack.c.b16 %v127, %v126
    %144 = vmatpush.bf16.msra.mxu0 %v135
    %145 = vmatpush.bf16.msra.mxu0 %v134
    %146 = vmatpush.bf16.msra.mxu0 %v133
    %147 = vmatpush.bf16.msra.mxu0 %v132
    %148 = vmatpush.bf16.msra.mxu0 %v131
    %149 = vmatpush.bf16.msra.mxu0 %v130
    %150 = vmatpush.bf16.msra.mxu0 %v129
    %151 = vmatpush.bf16.msra.mxu0 %v128
    %152 = vmatmul.bf16.gmra.mxu0 %v94
    %v153 = vpop.f32.mrf.mxu0
    %v154 = vadd.f32 %v88, %v153
    %v155 = vpop.f32.mrf.mxu0
    %v156 = vadd.f32 %v88, %v155
    %157 = vdwg.mxu0
    %vm158 = vcmp.gt.f32.partialorder %v154, 0.0
    %vm159 = vcmp.gt.f32.partialorder %v156, 0.0
    %v160 = vmul.f32 %v154, 0.01
    %v161 = vmul.f32 %v156, 0.01
    %v162 = vsel %vm158, %v154, %v160
    %v163 = vsel %vm159, %v156, %v161
    %v164 = vpack.c.bf16 %v163, %v162
    %v165 = vld [vmem:[#allocation7] sm:$0xf]
    %v166 = vld [vmem:[#allocation7 + $0x4] sm:$0xf]
    %v167 = vld [vmem:[#allocation7 + $0x8] sm:$0xf]
    %v168 = vld [vmem:[#allocation7 + $0xc] sm:$0xf]
    %v169 = vld [vmem:[#allocation7 + $0x10] sm:$0xf]
    %v170 = vld [vmem:[#allocation7 + $0x14] sm:$0xf]
    %v171 = vld [vmem:[#allocation7 + $0x18] sm:$0xf]
    %v172 = vld [vmem:[#allocation7 + $0x1c] sm:$0xf]
    %v173 = vld [vmem:[#allocation7 + $0x20] sm:$0xf]
    %v174 = vld [vmem:[#allocation7 + $0x24] sm:$0xf]
    %v175 = vld [vmem:[#allocation7 + $0x28] sm:$0xf]
    %v176 = vld [vmem:[#allocation7 + $0x2c] sm:$0xf]
    %v177 = vld [vmem:[#allocation7 + $0x30] sm:$0xf]
    %v178 = vld [vmem:[#allocation7 + $0x34] sm:$0xf]
    %v179 = vld [vmem:[#allocation7 + $0x38] sm:$0xf]
    %v180 = vld [vmem:[#allocation7 + $0x3c] sm:$0xf]
    %v181 = vld [vmem:[%s4] sm:$0x1]
    %v183 = vperm.slane %v181, 0
    %v201 = vunpack.c.l.b16 %v165
    %v202 = vunpack.c.l.b16 %v166
    %v203 = vunpack.c.l.b16 %v167
    %v204 = vunpack.c.l.b16 %v168
    %v205 = vunpack.c.l.b16 %v169
    %v206 = vunpack.c.l.b16 %v170
    %v207 = vunpack.c.l.b16 %v171
    %v208 = vunpack.c.l.b16 %v172
    %v209 = vunpack.c.l.b16 %v173
    %v210 = vunpack.c.l.b16 %v174
    %v211 = vunpack.c.l.b16 %v175
    %v212 = vunpack.c.l.b16 %v176
    %v213 = vunpack.c.l.b16 %v177
    %v214 = vunpack.c.l.b16 %v178
    %v215 = vunpack.c.l.b16 %v179
    %v216 = vunpack.c.l.b16 %v180
    %v217 = vpack.c.b16 %v202, %v201
    %v218 = vpack.c.b16 %v204, %v203
    %v219 = vpack.c.b16 %v206, %v205
    %v220 = vpack.c.b16 %v208, %v207
    %v221 = vpack.c.b16 %v210, %v209
    %v222 = vpack.c.b16 %v212, %v211
    %v223 = vpack.c.b16 %v214, %v213
    %v224 = vpack.c.b16 %v216, %v215
    %233 = vmatpush.bf16.msra.mxu0 %v224
    %234 = vmatpush.bf16.msra.mxu0 %v223
    %235 = vmatpush.bf16.msra.mxu0 %v222
    %236 = vmatpush.bf16.msra.mxu0 %v221
    %237 = vmatpush.bf16.msra.mxu0 %v220
    %238 = vmatpush.bf16.msra.mxu0 %v219
    %239 = vmatpush.bf16.msra.mxu0 %v218
    %240 = vmatpush.bf16.msra.mxu0 %v217
    %241 = vmatmul.bf16.gmra.mxu0 %v164
    %v242 = vpop.f32.mrf.mxu0
    %v243 = vadd.f32 %v183, %v242
    %v244 = vpop.f32.mrf.mxu0
    %v245 = vadd.f32 %v183, %v244
    %246 = vdwg.mxu0
    %v247 = vlaneseq
    %v248 = vand.u32 %v247, 127
    %vm249 = vcmp.lt.s32.totalorder %v248, 16
    %v250 = vsel %vm249, 1, 0
    %vm251 = vcmp.eq.s32.totalorder %v250, 1
    %v252 = vsel %vm251, %v243, -1e+30
    %v253 = vsel %vm251, %v245, -1e+30
    %254 = vmax.xlane.f32.xlu0 %v252
    %v255 = vpop.xlane.xlu0 %254
    %256 = vmax.xlane.f32.xlu0 %v253
    %v257 = vpop.xlane.xlu0 %256
    %v258 = vsub.f32 %v252, %v255
    %v259 = vsub.f32 %v253, %v257
    %v260 = vmul.f32 %v258, 1.442695
    %v261 = vpow.pop %v260
    %v262 = vmul.f32 %v259, 1.442695
    %v263 = vpow.pop %v262
    %264 = vadd.xlane.f32.xlu0 %v261
    %v265 = vpop.xlane.xlu0 %264
    %266 = vadd.xlane.f32.xlu0 %v263
    %v267 = vpop.xlane.xlu0 %266
    %v268 = vlog2.pop %v265
    %v269 = vmul.f32 %v268, 0.6931472
    %v270 = vlog2.pop %v267
    %v271 = vmul.f32 %v270, 0.6931472
    %v272 = vsub.f32 %v258, %v269
    %v273 = vsub.f32 %v259, %v271
    %274 = vst [vmem:[#allocation8] sm:$0xff] %v272
    %275 = vst [vmem:[#allocation8 + $0x8] sm:$0xff] %v273
    // Predicated region
    $region34: #{tpu_custom_call.1} parent=1 // pred_check
      _
    $region35: #{tpu_custom_call.1} parent=1 // pred_check_branch
      %277 = sbr.rel (0) target = $region37
    $region36: #{tpu_custom_call.1} parent=1 // pred_region
      %279 = vsyncadd [#allocation4], 0
      %s280 = sshll.u32 [#allocation8], 4
      %s281 = int_to_ptr.vmem [resolvable:$true] %s280
      %s282 = sshll.u32 %s5, 4
      %s283 = int_to_ptr.hbm [resolvable:$true] %s282
      %288 = dma.vmem_to_hbm [thread:$0]  %s281, 256, %s283, [#allocation4], 128, 128, 8
    $region37: #{tpu_custom_call.1} parent=1 // pred_fallthru
      _
    // Predicated region
    $region38: #{tpu_custom_call.1} parent=1 // pred_check
      _
    $region39: #{tpu_custom_call.1} parent=1 // pred_check_branch
      %290 = sbr.rel (0) target = $region41
    $region40: #{tpu_custom_call.1} parent=1 // pred_region
      %292 = dma.done [#allocation4], 256
    $region41: #{tpu_custom_call.1} parent=1 // pred_fallthru
      _
    %293 = vsyncpa [#allocation3], 1
    %294 = vsyncpa [#allocation6], 1
    %295 = vsyncpa [#allocation4], 1

// kernel: tpu_custom_call.1
$region0: #{tpu_custom_call.1}
  #allocation0 [shape = 'u32[]', space=smem, size = 0x4, offset = 0x4, fixed_abs, tag = 'smem constant byte address 0x4 - core index']
  #allocation1 [shape = 'u32[72,128]{1,0:T(1,128)}', space=vmem, size = 0x9000, scoped, tag = 'internal scratch']
  %s0 = inlined_call_operand.hbm [shape: bf16[16,128], index: 0, kind: input, shape index: {}]
  %s1 = inlined_call_operand.hbm [shape: bf16[128,128], index: 1, kind: input, shape index: {}]
  %s2 = inlined_call_operand.vmem [shape: f32[1,128], index: 2, kind: input, shape index: {}]
  %s3 = inlined_call_operand.hbm [shape: bf16[128,128], index: 3, kind: input, shape index: {}]
  %s4 = inlined_call_operand.vmem [shape: f32[1,128], index: 4, kind: input, shape index: {}]
  %s5 = inlined_call_operand.hbm [shape: f32[16,128], index: 5, kind: output, shape index: {}]
  %s6 = sld [smem:[#allocation0]]
  $region42: #{tpu_custom_call.1} parent=0
    _
  %s8 = ssub.s32 1, %s6
  %s9 = scalar_select 0, %s8, %s6
  $region1: #{tpu_custom_call.1} parent=0
    #allocation2 [shape = 'u8[4096]{0}', space=vmem, size = 0x1000, scoped, tag = 'input window, operand 0, single buffered']
    #allocation3 [shape = 's32[1]{0}', space=sflag, size = 0x4, scoped, tag = 'scoped memory for tpu_custom_call.1']
    #allocation4 [shape = 's32[1]{0}', space=sflag, size = 0x4, scoped, tag = 'scoped memory for tpu_custom_call.1']
    #allocation5 [shape = 'u8[32768]{0}', space=vmem, size = 0x8000, scoped, tag = 'input window, operand 1, single buffered']
    #allocation6 [shape = 's32[1]{0}', space=sflag, size = 0x4, scoped, tag = 'scoped memory for tpu_custom_call.1']
    #allocation7 [shape = 'u8[32768]{0}', space=vmem, size = 0x8000, scoped, tag = 'input window, operand 3, single buffered']
    #allocation8 [shape = 'u8[8192]{0}', space=vmem, size = 0x2000, scoped, tag = 'output window, operand 0, single buffered']
    %10 = vsyncpa [#allocation3], 0
    %11 = vsyncpa [#allocation6], 0
    %12 = vsyncpa [#allocation4], 0
    // Predicated region
    $region2: #{tpu_custom_call.1} parent=1 // pred_check
      _
    $region3: #{tpu_custom_call.1} parent=1 // pred_check_branch
      %14 = sbr.rel (0) target = $region5
    $region4: #{tpu_custom_call.1} parent=1 // pred_region
      %16 = vsyncadd [#allocation3], 0
      %s17 = sshll.u32 %s0, 4
      %s18 = int_to_ptr.hbm [resolvable:$true] %s17
      %s19 = sshll.u32 [#allocation2], 4
      %s20 = int_to_ptr.vmem [resolvable:$true] %s19
      %25 = dma.hbm_to_vmem [thread:$0]  %s18, 128, %s20, [#allocation3], 64, 64, 4
    $region5: #{tpu_custom_call.1} parent=1 // pred_fallthru
      _
    // Predicated region
    $region6: #{tpu_custom_call.1} parent=1 // pred_check
      _
    $region7: #{tpu_custom_call.1} parent=1 // pred_check_branch
      %27 = sbr.rel (0) target = $region9
    $region8: #{tpu_custom_call.1} parent=1 // pred_region
      %29 = vsyncadd [#allocation6], 0
      %s30 = sshll.u32 %s1, 4
      %s31 = int_to_ptr.hbm [resolvable:$true] %s30
      %s32 = sshll.u32 [#allocation5], 4
      %s33 = int_to_ptr.vmem [resolvable:$true] %s32
      %38 = dma.hbm_to_vmem [thread:$0]  %s31, 1024, %s33, [#allocation6], 64, 64, 4
    $region9: #{tpu_custom_call.1} parent=1 // pred_fallthru
      _
    // Predicated region
    $region10: #{tpu_custom_call.1} parent=1 // pred_check
      _
    $region11: #{tpu_custom_call.1} parent=1 // pred_check_branch
      %40 = sbr.rel (0) target = $region13
    $region12: #{tpu_custom_call.1} parent=1 // pred_region
      _
    $region13: #{tpu_custom_call.1} parent=1 // pred_fallthru
      _
    // Predicated region
    $region14: #{tpu_custom_call.1} parent=1 // pred_check
      _
    $region15: #{tpu_custom_call.1} parent=1 // pred_check_branch
      %42 = sbr.rel (0) target = $region17
    $region16: #{tpu_custom_call.1} parent=1 // pred_region
      %44 = vsyncadd [#allocation6], 0
      %s45 = sshll.u32 %s3, 4
      %s46 = int_to_ptr.hbm [resolvable:$true] %s45
      %s47 = sshll.u32 [#allocation7], 4
      %s48 = int_to_ptr.vmem [resolvable:$true] %s47
      %53 = dma.hbm_to_vmem [thread:$0]  %s46, 1024, %s48, [#allocation6], 64, 64, 4
    $region17: #{tpu_custom_call.1} parent=1 // pred_fallthru
      _
    // Predicated region
    $region18: #{tpu_custom_call.1} parent=1 // pred_check
      _
    $region19: #{tpu_custom_call.1} parent=1 // pred_check_branch
      %55 = sbr.rel (0) target = $region21
    $region20: #{tpu_custom_call.1} parent=1 // pred_region
      _
    $region21: #{tpu_custom_call.1} parent=1 // pred_fallthru
      _
    // Predicated region
    $region22: #{tpu_custom_call.1} parent=1 // pred_check
      _
    $region23: #{tpu_custom_call.1} parent=1 // pred_check_branch
      %57 = sbr.rel (0) target = $region25
    $region24: #{tpu_custom_call.1} parent=1 // pred_region
      %59 = dma.done [#allocation3], 128
    $region25: #{tpu_custom_call.1} parent=1 // pred_fallthru
      _
    // Predicated region
    $region26: #{tpu_custom_call.1} parent=1 // pred_check
      _
    $region27: #{tpu_custom_call.1} parent=1 // pred_check_branch
      %61 = sbr.rel (0) target = $region29
    $region28: #{tpu_custom_call.1} parent=1 // pred_region
      %63 = dma.done [#allocation6], 1024
    $region29: #{tpu_custom_call.1} parent=1 // pred_fallthru
      _
    // Predicated region
    $region30: #{tpu_custom_call.1} parent=1 // pred_check
      _
    $region31: #{tpu_custom_call.1} parent=1 // pred_check_branch
      %65 = sbr.rel (0) target = $region33
    $region32: #{tpu_custom_call.1} parent=1 // pred_region
      %67 = dma.done [#allocation6], 1024
    $region33: #{tpu_custom_call.1} parent=1 // pred_fallthru
      _
    %v68 = vld [vmem:[#allocation2] sm:$0xf]
    %v69 = vld [vmem:[#allocation2 + $0x4] sm:$0xf]
    %v70 = vld [vmem:[#allocation5] sm:$0xf]
    %v71 = vld [vmem:[#allocation5 + $0x4] sm:$0xf]
    %v72 = vld [vmem:[#allocation5 + $0x8] sm:$0xf]
    %v73 = vld [vmem:[#allocation5 + $0xc] sm:$0xf]
    %v74 = vld [vmem:[#allocation5 + $0x10] sm:$0xf]
    %v75 = vld [vmem:[#allocation5 + $0x14] sm:$0xf]
    %v76 = vld [vmem:[#allocation5 + $0x18] sm:$0xf]
    %v77 = vld [vmem:[#allocation5 + $0x1c] sm:$0xf]
    %v78 = vld [vmem:[#allocation5 + $0x20] sm:$0xf]
    %v79 = vld [vmem:[#allocation5 + $0x24] sm:$0xf]
    %v80 = vld [vmem:[#allocation5 + $0x28] sm:$0xf]
    %v81 = vld [vmem:[#allocation5 + $0x2c] sm:$0xf]
    %v82 = vld [vmem:[#allocation5 + $0x30] sm:$0xf]
    %v83 = vld [vmem:[#allocation5 + $0x34] sm:$0xf]
    %v84 = vld [vmem:[#allocation5 + $0x38] sm:$0xf]
    %v85 = vld [vmem:[#allocation5 + $0x3c] sm:$0xf]
    %v86 = vld [vmem:[%s2] sm:$0x1]
    %v88 = vperm.slane %v86, 0
    %v92 = vunpack.c.l.b16 %v68
    %v93 = vunpack.c.l.b16 %v69
    %v94 = vpack.c.b16 %v93, %v92
    %v112 = vunpack.c.l.b16 %v70
    %v113 = vunpack.c.l.b16 %v71
    %v114 = vunpack.c.l.b16 %v72
    %v115 = vunpack.c.l.b16 %v73
    %v116 = vunpack.c.l.b16 %v74
    %v117 = vunpack.c.l.b16 %v75
    %v118 = vunpack.c.l.b16 %v76
    %v119 = vunpack.c.l.b16 %v77
    %v120 = vunpack.c.l.b16 %v78
    %v121 = vunpack.c.l.b16 %v79
    %v122 = vunpack.c.l.b16 %v80
    %v123 = vunpack.c.l.b16 %v81
    %v124 = vunpack.c.l.b16 %v82
    %v125 = vunpack.c.l.b16 %v83
    %v126 = vunpack.c.l.b16 %v84
    %v127 = vunpack.c.l.b16 %v85
    %v128 = vpack.c.b16 %v113, %v112
    %v129 = vpack.c.b16 %v115, %v114
    %v130 = vpack.c.b16 %v117, %v116
    %v131 = vpack.c.b16 %v119, %v118
    %v132 = vpack.c.b16 %v121, %v120
    %v133 = vpack.c.b16 %v123, %v122
    %v134 = vpack.c.b16 %v125, %v124
    %v135 = vpack.c.b16 %v127, %v126
    %144 = vmatpush.bf16.msra.mxu0 %v135
    %145 = vmatpush.bf16.msra.mxu0 %v134
    %146 = vmatpush.bf16.msra.mxu0 %v133
    %147 = vmatpush.bf16.msra.mxu0 %v132
    %148 = vmatpush.bf16.msra.mxu0 %v131
    %149 = vmatpush.bf16.msra.mxu0 %v130
    %150 = vmatpush.bf16.msra.mxu0 %v129
    %151 = vmatpush.bf16.msra.mxu0 %v128
    %152 = vmatmul.bf16.gmra.mxu0 %v94
    %v153 = vpop.f32.mrf.mxu0
    %v154 = vadd.f32 %v88, %v153
    %v155 = vpop.f32.mrf.mxu0
    %v156 = vadd.f32 %v88, %v155
    %157 = vdwg.mxu0
    %vm158 = vcmp.gt.f32.partialorder %v154, 0.0
    %vm159 = vcmp.gt.f32.partialorder %v156, 0.0
    %v160 = vmul.f32 %v154, 0.01
    %v161 = vmul.f32 %v156, 0.01
    %v162 = vsel %vm158, %v154, %v160
    %v163 = vsel %vm159, %v156, %v161
    %v164 = vpack.c.bf16 %v163, %v162
    %v165 = vld [vmem:[#allocation7] sm:$0xf]
    %v166 = vld [vmem:[#allocation7 + $0x4] sm:$0xf]
    %v167 = vld [vmem:[#allocation7 + $0x8] sm:$0xf]
    %v168 = vld [vmem:[#allocation7 + $0xc] sm:$0xf]
    %v169 = vld [vmem:[#allocation7 + $0x10] sm:$0xf]
    %v170 = vld [vmem:[#allocation7 + $0x14] sm:$0xf]
    %v171 = vld [vmem:[#allocation7 + $0x18] sm:$0xf]
    %v172 = vld [vmem:[#allocation7 + $0x1c] sm:$0xf]
    %v173 = vld [vmem:[#allocation7 + $0x20] sm:$0xf]
    %v174 = vld [vmem:[#allocation7 + $0x24] sm:$0xf]
    %v175 = vld [vmem:[#allocation7 + $0x28] sm:$0xf]
    %v176 = vld [vmem:[#allocation7 + $0x2c] sm:$0xf]
    %v177 = vld [vmem:[#allocation7 + $0x30] sm:$0xf]
    %v178 = vld [vmem:[#allocation7 + $0x34] sm:$0xf]
    %v179 = vld [vmem:[#allocation7 + $0x38] sm:$0xf]
    %v180 = vld [vmem:[#allocation7 + $0x3c] sm:$0xf]
    %v181 = vld [vmem:[%s4] sm:$0x1]
    %v183 = vperm.slane %v181, 0
    %v201 = vunpack.c.l.b16 %v165
    %v202 = vunpack.c.l.b16 %v166
    %v203 = vunpack.c.l.b16 %v167
    %v204 = vunpack.c.l.b16 %v168
    %v205 = vunpack.c.l.b16 %v169
    %v206 = vunpack.c.l.b16 %v170
    %v207 = vunpack.c.l.b16 %v171
    %v208 = vunpack.c.l.b16 %v172
    %v209 = vunpack.c.l.b16 %v173
    %v210 = vunpack.c.l.b16 %v174
    %v211 = vunpack.c.l.b16 %v175
    %v212 = vunpack.c.l.b16 %v176
    %v213 = vunpack.c.l.b16 %v177
    %v214 = vunpack.c.l.b16 %v178
    %v215 = vunpack.c.l.b16 %v179
    %v216 = vunpack.c.l.b16 %v180
    %v217 = vpack.c.b16 %v202, %v201
    %v218 = vpack.c.b16 %v204, %v203
    %v219 = vpack.c.b16 %v206, %v205
    %v220 = vpack.c.b16 %v208, %v207
    %v221 = vpack.c.b16 %v210, %v209
    %v222 = vpack.c.b16 %v212, %v211
    %v223 = vpack.c.b16 %v214, %v213
    %v224 = vpack.c.b16 %v216, %v215
    %233 = vmatpush.bf16.msra.mxu0 %v224
    %234 = vmatpush.bf16.msra.mxu0 %v223
    %235 = vmatpush.bf16.msra.mxu0 %v222
    %236 = vmatpush.bf16.msra.mxu0 %v221
    %237 = vmatpush.bf16.msra.mxu0 %v220
    %238 = vmatpush.bf16.msra.mxu0 %v219
    %239 = vmatpush.bf16.msra.mxu0 %v218
    %240 = vmatpush.bf16.msra.mxu0 %v217
    %241 = vmatmul.bf16.gmra.mxu0 %v164
    %v242 = vpop.f32.mrf.mxu0
    %v243 = vadd.f32 %v183, %v242
    %v244 = vpop.f32.mrf.mxu0
    %v245 = vadd.f32 %v183, %v244
    %246 = vdwg.mxu0
    %v247 = vlaneseq
    %v248 = vand.u32 %v247, 127
    %vm249 = vcmp.lt.s32.totalorder %v248, 16
    %v250 = vsel %vm249, 1, 0
    %vm251 = vcmp.eq.s32.totalorder %v250, 1
    %v252 = vsel %vm251, %v243, -1e+30
    %v253 = vsel %vm251, %v245, -1e+30
    %254 = vmax.xlane.f32.xlu0 %v252
    %v255 = vpop.xlane.xlu0 %254
    %256 = vmax.xlane.f32.xlu0 %v253
    %v257 = vpop.xlane.xlu0 %256
    %v258 = vsub.f32 %v252, %v255
    %v259 = vsub.f32 %v253, %v257
    %v260 = vmul.f32 %v258, 1.442695
    %v261 = vpow.pop %v260
    %v262 = vmul.f32 %v259, 1.442695
    %v263 = vpow.pop %v262
    %264 = vadd.xlane.f32.xlu0 %v261
    %v265 = vpop.xlane.xlu0 %264
    %266 = vadd.xlane.f32.xlu0 %v263
    %v267 = vpop.xlane.xlu0 %266
    %v268 = vlog2.pop %v265
    %v269 = vmul.f32 %v268, 0.6931472
    %v270 = vlog2.pop %v267
    %v271 = vmul.f32 %v270, 0.6931472
    %v272 = vsub.f32 %v258, %v269
    %v273 = vsub.f32 %v259, %v271
    %274 = vst [vmem:[#allocation8] sm:$0xff] %v272
    %275 = vst [vmem:[#allocation8 + $0x8] sm:$0xff] %v273
    // Predicated region
    $region34: #{tpu_custom_call.1} parent=1 // pred_check
      _
    $region35: #{tpu_custom_call.1} parent=1 // pred_check_branch
      %277 = sbr.rel (0) target = $region37
    $region36: #{tpu_custom_call.1} parent=1 // pred_region
      %279 = vsyncadd [#allocation4], 0
      %s280 = sshll.u32 [#allocation8], 4
      %s281 = int_to_ptr.vmem [resolvable:$true] %s280
      %s282 = sshll.u32 %s5, 4
      %s283 = int_to_ptr.hbm [resolvable:$true] %s282
      %288 = dma.vmem_to_hbm [thread:$0]  %s281, 256, %s283, [#allocation4], 128, 128, 8
    $region37: #{tpu_custom_call.1} parent=1 // pred_fallthru
      _
    // Predicated region
    $region38: #{tpu_custom_call.1} parent=1 // pred_check
      _
    $region39: #{tpu_custom_call.1} parent=1 // pred_check_branch
      %290 = sbr.rel (0) target = $region41
    $region40: #{tpu_custom_call.1} parent=1 // pred_region
      %292 = dma.done [#allocation4], 256
    $region41: #{tpu_custom_call.1} parent=1 // pred_fallthru
      _
    %293 = vsyncpa [#allocation3], 1
    %294 = vsyncpa [#allocation6], 1
    %295 = vsyncpa [#allocation4], 1

</llo_original>
